<compile_context>
chip_gen: v7x
topology: tpu7x:2x2x1
jax: 0.10.0
libtpu: 0.0.40
codegen_flags: <defaults>
</compile_context>

<pallas_src>
import jax
import jax.numpy as jnp
from jax.experimental import pallas as pl
from jax.experimental.pallas import tpu as pltpu


def _make_focal_kernel(gamma, use_alpha):
    gamma = float(gamma)

    def kernel(*refs):
        if use_alpha:
            x_ref, t_ref, a_ref, o_ref = refs
        else:
            x_ref, t_ref, o_ref = refs

        x = x_ref[...].astype(jnp.float32)            # (C, TN)  class-major
        t = t_ref[...]                                # (1, TN)  int32 targets

        # Numerically stable log-softmax over the class (sublane) axis,
        # reduced straight to the target-class entry (never materializes the
        # full softmax / log-softmax).
        m = jnp.max(x, axis=0, keepdims=True)         # (1, TN)
        shifted = x - m                               # (C, TN)
        denom = jnp.sum(jnp.exp(shifted), axis=0, keepdims=True)   # (1, TN)

        cls = jax.lax.broadcasted_iota(jnp.int32, x.shape, 0)      # (C, TN)
        onehot = cls == t                                          # (C, TN)
        shifted_t = jnp.sum(jnp.where(onehot, shifted, 0.0),
                            axis=0, keepdims=True)                 # (1, TN)

        logpt = shifted_t - jnp.log(denom)                         # (1, TN)

        # pt must come from the UNSCALED log-prob (alpha only scales logpt,
        # matching the PyTorch module).
        if gamma != 0.0:
            pt = jnp.exp(logpt)                                    # (1, TN)

        if use_alpha:
            alpha = a_ref[...].astype(jnp.float32)                 # (C, 1)
            at = jnp.sum(jnp.where(onehot, alpha, 0.0),
                         axis=0, keepdims=True)                    # (1, TN)
            logpt = logpt * at

        if gamma == 0.0:
            loss = -logpt
        else:
            # Clamp at 0 in BOTH paths so fp error (pt marginally > 1) can't
            # sign-flip / NaN the modulator.
            one_minus = jnp.maximum(1.0 - pt, 0.0)
            if gamma.is_integer() and 0.0 < gamma <= 8.0:
                mod = one_minus
                for _ in range(int(gamma) - 1):
                    mod = mod * one_minus
            else:
                mod = jnp.power(one_minus, jnp.float32(gamma))
            loss = -mod * logpt

        o_ref[...] = loss.astype(o_ref.dtype)                      # (1, TN)

    return kernel


def _tpu_generation():
    """Best-effort TPU generation (4/5/6/7) from device_kind, or None."""
    try:
        kind = jax.devices()[0].device_kind.lower()
    except Exception:
        return None
    for g in (7, 6, 5, 4):
        if f"v{g}" in kind or f"tpu{g}" in kind:
            return g
    return None


def _round_down_128(x):
    return max(128, (int(x) // 128) * 128)


def _auto_row_tile(n_rows, n_classes, itemsize):
    """Row tile sized by bytes-per-step (not rows): each grid step should move
    ~1-4 MiB of logits (generation-aware) so the ~0.35 us per-step pipeline
    overhead is amortized; keep the grid long enough to feed both v7x
    TensorCores; keep the double-buffered VMEM footprint well under the
    tightest (v7x, 64 MiB physical) VMEM budget."""
    gen = _tpu_generation()
    if gen is not None and gen >= 7:
        step_bytes, min_steps = 4 << 20, 8      # 3.2 TB/s HBM, 2 TensorCores
    elif gen == 6:
        step_bytes, min_steps = 2 << 20, 2      # ~1.4 TB/s HBM
    elif gen is not None and gen <= 5:
        step_bytes, min_steps = 1 << 20, 2      # ~0.8 TB/s HBM amortizes sooner
    else:
        step_bytes, min_steps = 2 << 20, 4      # unknown / interpreter

    c = max(int(n_classes), 1)
    itemsize = max(int(itemsize), 1)

    rt = step_bytes // (c * itemsize)

    # Double-buffered VMEM per row of tile: (C, rt) logits block plus the
    # (1, rt) target and output blocks (each padded to 8 f32 sublanes).
    per_row_vmem = 2 * (c * itemsize + 2 * 8 * 4)
    rt = min(rt, (32 << 20) // per_row_vmem)

    # Keep at least `min_steps` grid steps once the problem is big enough.
    rows_128 = -(-int(n_rows) // 128) * 128
    rt = min(rt, max(128, rows_128 // min_steps))

    return _round_down_128(rt)


def _vmem_limit_bytes(row_tile, n_classes, itemsize):
    """Scoped-VMEM limit derived from the actual double-buffered blocks,
    including the 8x sublane inflation of the (1, row_tile) blocks."""
    c = max(int(n_classes), 1)
    logits_block = c * row_tile * max(int(itemsize), 1)
    padded_vec_block = 8 * row_tile * 4          # (1, rt) pads to 8 sublanes
    need = 2 * (logits_block + 2 * padded_vec_block)   # double-buffered
    need += c * 4 + (2 << 20)                          # alpha + headroom
    return int(min(max(need, 16 << 20), 100 << 20))


def focal_loss(logits, target, *, gamma=0.0, alpha=None, reduction="none",
               row_tile=None, inputs_class_major=False):
    """Pallas TPU implementation of FocalLoss.forward.

    logits: (N, C) float array; or (C, N) if inputs_class_major=True, which
            skips the wrapper-side relayout (cheapest way to call this).
    target: (N,) integer class indices; must lie in [0, C).  There is no
            ignore_index: out-of-range targets select an empty one-hot and
            silently yield -(-log sum exp)-style values instead of erroring.
    alpha:  optional length-C per-class weights.
    """
    if inputs_class_major:
        C, N = logits.shape
        x_cm = logits                                              # (C, N)
    else:
        N, C = logits.shape
        # TODO(synk): this row-major -> class-major relayout is the only extra
        # HBM pass left; emit class-major logits upstream (and pass
        # inputs_class_major=True) to remove it entirely.
        x_cm = logits.T                                            # (C, N)

    itemsize = jnp.dtype(logits.dtype).itemsize
    if row_tile is None:
        row_tile = _auto_row_tile(N, C, itemsize)
    assert row_tile % 128 == 0, "row_tile must be a multiple of 128"

    t2d = target.astype(jnp.int32).reshape(1, N)

    use_alpha = alpha is not None
    operands = [x_cm, t2d]
    in_specs = [
        pl.BlockSpec((C, row_tile), lambda i: (0, i)),             # logits
        pl.BlockSpec((1, row_tile), lambda i: (0, i)),             # targets
    ]
    if use_alpha:
        alpha_arr = jnp.asarray(alpha, dtype=jnp.float32).reshape(C, 1)
        operands.append(alpha_arr)
        in_specs.append(pl.BlockSpec((C, 1), lambda i: (0, 0)))    # resident

    kernel = _make_focal_kernel(gamma, use_alpha)
    grid = (pl.cdiv(N, row_tile),)        # ragged last block handled by Pallas

    out = pl.pallas_call(
        kernel,
        out_shape=jax.ShapeDtypeStruct((1, N), jnp.float32),
        grid_spec=pltpu.PrefetchScalarGridSpec(
            num_scalar_prefetch=0,
            grid=grid,
            in_specs=in_specs,
            out_specs=pl.BlockSpec((1, row_tile), lambda i: (0, i)),
        ),
        compiler_params=pltpu.CompilerParams(
            dimension_semantics=("parallel",),
            vmem_limit_bytes=_vmem_limit_bytes(row_tile, C, itemsize),
        ),
    )(*operands)

    loss = out[0]                                                  # (N,)
    if reduction == "none":
        return loss
    if reduction == "mean":
        return loss.mean()
    return loss.sum()


def _focal_loss_ref(logits, target, gamma, alpha):
    """Pure-JAX reference mirroring the PyTorch forward (reduction='none')."""
    p = jax.nn.softmax(logits, axis=-1)
    logp = jax.nn.log_softmax(logits, axis=-1)
    pt = jnp.take_along_axis(p, target[:, None], axis=1)[:, 0]
    logpt = jnp.take_along_axis(logp, target[:, None], axis=1)[:, 0]
    if alpha is not None:
        at = jnp.asarray(alpha, jnp.float32)[target]
        logpt = logpt * at
    return -1.0 * (1.0 - pt) ** gamma * logpt


if __name__ == "__main__":
    key = jax.random.PRNGKey(0)
    k1, k2 = jax.random.split(key)

    N, C = 300, 8                    # N not a multiple of 128 -> ragged tail
    gamma = 2.0
    alpha = [0.25, 0.75, 1.0, 0.5, 1.25, 0.9, 0.6, 1.1]

    logits = jax.random.normal(k1, (N, C), dtype=jnp.float32)
    target = jax.random.randint(k2, (N,), 0, C, dtype=jnp.int32)

    ref = _focal_loss_ref(logits, target, gamma, alpha)

    # gamma=2 (integer fast path), alpha, 'none'; row_tile=128 -> 3 grid steps
    loss = focal_loss(logits, target, gamma=gamma, alpha=alpha,
                      reduction="none", row_tile=128)
    loss = jax.block_until_ready(loss)
    assert loss.shape == (N,)
    assert jnp.allclose(loss, ref, atol=1e-5, rtol=1e-5), (loss, ref)

    # same math, feeding class-major logits (skips the wrapper relayout pass)
    loss_cm = focal_loss(logits.T, target, gamma=gamma, alpha=alpha,
                         reduction="none", row_tile=128,
                         inputs_class_major=True)
    loss_cm = jax.block_until_ready(loss_cm)
    assert jnp.allclose(loss_cm, ref, atol=1e-5, rtol=1e-5)

    # no-alpha, gamma=0, mean reduction, auto (byte-targeted) row tile
    loss_mean = focal_loss(logits, target, gamma=0.0, alpha=None,
                           reduction="mean")
    loss_mean = jax.block_until_ready(loss_mean)
    ref_mean = _focal_loss_ref(logits, target, 0.0, None).mean()
    assert jnp.allclose(loss_mean, ref_mean, atol=1e-5, rtol=1e-5)

    # non-integer gamma (float pow path), sum reduction
    loss_sum = focal_loss(logits, target, gamma=1.5, alpha=None,
                          reduction="sum")
    loss_sum = jax.block_until_ready(loss_sum)
    ref_sum = _focal_loss_ref(logits, target, 1.5, None).sum()
    assert jnp.allclose(loss_sum, ref_sum, atol=1e-4, rtol=1e-5)

    print("KERNEL_OK")
</pallas_src>

<mosaic_0001>
module attributes {stable_mosaic.version = 11 : i64} {
  func.func @kernel(%arg0: i32, %arg1: memref<8x128xf32, #tpu.memory_space<vmem>>, %arg2: memref<1x128xi32, #tpu.memory_space<vmem>>, %arg3: memref<8x1xf32, #tpu.memory_space<vmem>>, %arg4: memref<1x128xf32, #tpu.memory_space<vmem>>) attributes {dimension_semantics = [#tpu.dimension_semantics<parallel>], iteration_bounds = array<i64: 3>, scalar_prefetch = 0 : i64, scratch_operands = 0 : i64, tpu.core_type = #tpu.core_type<tc>, window_params = [{transform_indices = @transform_0, window_bounds = array<i64: 8, 128>}, {transform_indices = @transform_1, window_bounds = array<i64: 1, 128>}, {pipeline_mode = #tpu.pipeline_mode<synchronous>, transform_indices = @transform_2, window_bounds = array<i64: 8, 1>}, {transform_indices = @transform_3, window_bounds = array<i64: 1, 128>}]} {
    %c0 = arith.constant 0 : index
    %c0_0 = arith.constant 0 : index
    %0 = vector.load %arg1[%c0, %c0_0] : memref<8x128xf32, #tpu.memory_space<vmem>>, vector<8x128xf32>
    %c0_1 = arith.constant 0 : index
    %c0_2 = arith.constant 0 : index
    %1 = vector.load %arg2[%c0_1, %c0_2] : memref<1x128xi32, #tpu.memory_space<vmem>>, vector<1x128xi32>
    %cst = arith.constant dense<0xFF800000> : vector<128xf32>
    %2 = vector.multi_reduction <maximumf>, %0, %cst [0] : vector<8x128xf32> to vector<128xf32>
    %3 = vector.shape_cast %2 : vector<128xf32> to vector<1x128xf32>
    %4 = vector.broadcast %3 : vector<1x128xf32> to vector<8x128xf32>
    %5 = arith.subf %0, %4 : vector<8x128xf32>
    %6 = math.exp %5 : vector<8x128xf32>
    %cst_3 = arith.constant dense<0.000000e+00> : vector<128xf32>
    %7 = vector.multi_reduction <add>, %6, %cst_3 [0] : vector<8x128xf32> to vector<128xf32>
    %8 = vector.shape_cast %7 : vector<128xf32> to vector<1x128xf32>
    %9 = tpu.iota {dimensions = array<i32: 0>} : vector<8x128xi32>
    %10 = vector.broadcast %1 : vector<1x128xi32> to vector<8x128xi32>
    %11 = arith.cmpi eq, %9, %10 : vector<8x128xi32>
    %cst_4 = arith.constant 0.000000e+00 : f32
    %12 = vector.broadcast %cst_4 : f32 to vector<8x128xf32>
    %13 = arith.select %11, %5, %12 : vector<8x128xi1>, vector<8x128xf32>
    %cst_5 = arith.constant dense<0.000000e+00> : vector<128xf32>
    %14 = vector.multi_reduction <add>, %13, %cst_5 [0] : vector<8x128xf32> to vector<128xf32>
    %15 = vector.shape_cast %14 : vector<128xf32> to vector<1x128xf32>
    %16 = math.log %8 : vector<1x128xf32>
    %17 = arith.subf %15, %16 : vector<1x128xf32>
    %18 = math.exp %17 : vector<1x128xf32>
    %c0_6 = arith.constant 0 : index
    %c0_7 = arith.constant 0 : index
    %19 = vector.load %arg3[%c0_6, %c0_7] : memref<8x1xf32, #tpu.memory_space<vmem>>, vector<8x1xf32>
    %cst_8 = arith.constant 0.000000e+00 : f32
    %20 = vector.shape_cast %19 : vector<8x1xf32> to vector<8x1xf32>
    %21 = vector.broadcast %20 : vector<8x1xf32> to vector<8x128xf32>
    %22 = vector.broadcast %cst_8 : f32 to vector<8x128xf32>
    %23 = arith.select %11, %21, %22 : vector<8x128xi1>, vector<8x128xf32>
    %cst_9 = arith.constant dense<0.000000e+00> : vector<128xf32>
    %24 = vector.multi_reduction <add>, %23, %cst_9 [0] : vector<8x128xf32> to vector<128xf32>
    %25 = vector.shape_cast %24 : vector<128xf32> to vector<1x128xf32>
    %26 = arith.mulf %17, %25 : vector<1x128xf32>
    %cst_10 = arith.constant 1.000000e+00 : f32
    %27 = vector.broadcast %cst_10 : f32 to vector<1x128xf32>
    %28 = arith.subf %27, %18 : vector<1x128xf32>
    %cst_11 = arith.constant 0.000000e+00 : f32
    %29 = vector.broadcast %cst_11 : f32 to vector<1x128xf32>
    %30 = arith.maximumf %28, %29 : vector<1x128xf32>
    %31 = arith.mulf %30, %30 : vector<1x128xf32>
    %cst_12 = arith.constant 0.000000e+00 : f32
    %32 = vector.broadcast %cst_12 : f32 to vector<1x128xf32>
    %33 = arith.subf %32, %31 : vector<1x128xf32>
    %34 = arith.mulf %33, %26 : vector<1x128xf32>
    %c0_13 = arith.constant 0 : index
    %c0_14 = arith.constant 0 : index
    %35 = vector.load %arg4[%c0_13, %c0_14] : memref<1x128xf32, #tpu.memory_space<vmem>>, vector<1x128xf32>
    tpu.vector_store %arg4[%c0_13, %c0_14], %34 {strides = array<i32>} : memref<1x128xf32, #tpu.memory_space<vmem>>, vector<1x128xf32>,
    return
  }
  func.func @transform_0(%arg0: i32) -> (i32, i32) {
    %c0_i32 = arith.constant 0 : i32
    %c0_i32_0 = arith.constant 0 : i32
    return %c0_i32, %arg0 : i32, i32
  }
  func.func @transform_1(%arg0: i32) -> (i32, i32) {
    %c0_i32 = arith.constant 0 : i32
    %c0_i32_0 = arith.constant 0 : i32
    return %c0_i32, %arg0 : i32, i32
  }
  func.func @transform_2(%arg0: i32) -> (i32, i32) {
    %c0_i32 = arith.constant 0 : i32
    %c0_i32_0 = arith.constant 0 : i32
    %c0_i32_1 = arith.constant 0 : i32
    return %c0_i32, %c0_i32_0 : i32, i32
  }
  func.func @transform_3(%arg0: i32) -> (i32, i32) {
    %c0_i32 = arith.constant 0 : i32
    %c0_i32_0 = arith.constant 0 : i32
    return %c0_i32, %arg0 : i32, i32
  }
}

</mosaic_0001>

<llo_original>
// kernel: tpu_custom_call.1
$region0: #{tpu_custom_call.1}
  #allocation0 [shape = 'u32[]', space=smem, size = 0x4, offset = 0x4, fixed_abs, tag = 'smem constant byte address 0x4 - core index']
  #allocation1 [shape = 'u32[144,128]{1,0:T(1,128)}', space=vmem, size = 0x12000, scoped, tag = 'internal scratch']
  %s0 = inlined_call_operand.hbm [shape: f32[8,300], index: 0, kind: input, shape index: {}]
  %s1 = inlined_call_operand.vmem [shape: s32[1,300], index: 1, kind: input, shape index: {}]
  %s2 = inlined_call_operand.vmem [shape: f32[8,1], index: 2, kind: input, shape index: {}]
  %s3 = inlined_call_operand.hbm [shape: f32[1,300], index: 3, kind: output, shape index: {}]
  %s4 = sld [smem:[#allocation0]]
  $region49: #{tpu_custom_call.1} parent=0
    _
  %s6 = ssub.s32 1, %s4
  %s7 = scalar_select 0, %s6, %s4
  $region1: #{tpu_custom_call.1} parent=0
    #allocation2 [shape = 'u8[8192]{0}', space=vmem, size = 0x2000, scoped, tag = 'input window, operand 0']
    #allocation3 [shape = 's32[2]{0}', space=sflag, size = 0x8, scoped, tag = 'scoped memory for tpu_custom_call.1']
    #allocation4 [shape = 's32[2]{0}', space=sflag, size = 0x8, scoped, tag = 'scoped memory for tpu_custom_call.1']
    #allocation5 [shape = 'u8[1024]{0}', space=vmem, size = 0x400, scoped, tag = 'output window, operand 0']
    %8 = vsyncpa [#allocation3], 0
    %s9 = scalar_lea.sflag [#allocation3], 1
    %10 = vsyncpa %s9, 0
    %11 = vsyncpa [#allocation4], 0
    %s12 = scalar_lea.sflag [#allocation4], 1
    %13 = vsyncpa %s12, 0
    loop: start=0, step=1, limit=5
    $region2: #{tpu_custom_call.1} parent=1 // loop_pre_header
      _
    $region3: #{tpu_custom_call.1} parent=1 // loop_header
      %s15 = sphi 0, %s19
      %p16 = scmp.ge.s32.totalorder %s15, 5
      %s25 = sphi 0, %s27
      %s28 = sphi 0, %s25
      %s29 = sphi 0, %s28
      %s45 = sphi 0, %s29
      %s51 = sphi 0, %s53
      %s54 = sphi 0, %s51
      %s55 = sphi 0, %s54
      %s71 = sphi 0, %s55
      %s75 = sphi 0, %s75
      %s77 = sphi 0, %s75
      %s78 = sphi 0, %s77
      %s92 = sphi 0, %s78
      %s98 = sphi 0, %s100
      %s101 = sphi 0, %s98
      %s102 = sphi 0, %s101
      %s118 = sphi 0, %s102
    $region4: #{tpu_custom_call.1} parent=1 // loop_header_branch
      %18 = sbr.rel (%p16) target = $region8
    $region5: #{tpu_custom_call.1} parent=1 // loop_body
      %s20 = ssub.s32 %s15, 1
      %s21 = ssub.s32 %s15, 2
      %s22 = sadd.s32 %s15, 1
      %s23 = ssub.s32 %s15, %s22
      %p24 = scmp.eq.s32.totalorder %s23, 0
      %s26 = sadd.s32 %s25, 1
      %s27 = scalar_select %p24, %s25, %s26
      %p30 = pneg %p24
      %p31 = scmp.eq.s32.totalorder %s15, 2
      %p32 = por %p30, %p31
      %p33 = scmp.ne.s32.totalorder %s25, %s28
      %p34 = scmp.eq.s32.totalorder %s15, 0
      %p35 = por %p33, %p34
      %p36 = scmp.ne.s32.totalorder %s25, %s28
      %p37 = scmp.eq.s32.totalorder %s20, 2
      %p38 = por %p36, %p37
      %p39 = scmp.ne.s32.totalorder %s28, %s29
      %p40 = scmp.eq.s32.totalorder %s20, 0
      %p41 = por %p39, %p40
      %p42 = scmp.ne.s32.totalorder %s28, %s29
      %p43 = scmp.eq.s32.totalorder %s21, 2
      %p44 = por %p42, %p43
      %p46 = scmp.ne.s32.totalorder %s29, %s45
      %p47 = scmp.eq.s32.totalorder %s21, 0
      %p48 = por %p46, %p47
      %s49 = ssub.s32 %s15, %s22
      %p50 = scmp.eq.s32.totalorder %s49, 0
      %s52 = sadd.s32 %s51, 1
      %s53 = scalar_select %p50, %s51, %s52
      %p56 = pneg %p50
      %p57 = scmp.eq.s32.totalorder %s15, 2
      %p58 = por %p56, %p57
      %p59 = scmp.ne.s32.totalorder %s51, %s54
      %p60 = scmp.eq.s32.totalorder %s15, 0
      %p61 = por %p59, %p60
      %p62 = scmp.ne.s32.totalorder %s51, %s54
      %p63 = scmp.eq.s32.totalorder %s20, 2
      %p64 = por %p62, %p63
      %p65 = scmp.ne.s32.totalorder %s54, %s55
      %p66 = scmp.eq.s32.totalorder %s20, 0
      %p67 = por %p65, %p66
      %p68 = scmp.ne.s32.totalorder %s54, %s55
      %p69 = scmp.eq.s32.totalorder %s21, 2
      %p70 = por %p68, %p69
      %p72 = scmp.ne.s32.totalorder %s55, %s71
      %p73 = scmp.eq.s32.totalorder %s21, 0
      %p74 = por %p72, %p73
      %s76 = sadd.s32 %s75, 1
      %p79 = scmp.eq.s32.totalorder %s15, 2
      %p80 = scmp.ne.s32.totalorder %s75, %s77
      %p81 = scmp.eq.s32.totalorder %s15, 0
      %p82 = por %p80, %p81
      %p83 = scmp.ne.s32.totalorder %s75, %s77
      %p84 = scmp.eq.s32.totalorder %s20, 2
      %p85 = por %p83, %p84
      %p86 = scmp.ne.s32.totalorder %s77, %s78
      %p87 = scmp.eq.s32.totalorder %s20, 0
      %p88 = por %p86, %p87
      %p89 = scmp.ne.s32.totalorder %s77, %s78
      %p90 = scmp.eq.s32.totalorder %s21, 2
      %p91 = por %p89, %p90
      %p93 = scmp.ne.s32.totalorder %s78, %s92
      %p94 = scmp.eq.s32.totalorder %s21, 0
      %p95 = por %p93, %p94
      %s96 = ssub.s32 %s15, %s22
      %p97 = scmp.eq.s32.totalorder %s96, 0
      %s99 = sadd.s32 %s98, 1
      %s100 = scalar_select %p97, %s98, %s99
      %p103 = pneg %p97
      %p104 = scmp.eq.s32.totalorder %s15, 2
      %p105 = por %p103, %p104
      %p106 = scmp.ne.s32.totalorder %s98, %s101
      %p107 = scmp.eq.s32.totalorder %s15, 0
      %p108 = por %p106, %p107
      %p109 = scmp.ne.s32.totalorder %s98, %s101
      %p110 = scmp.eq.s32.totalorder %s20, 2
      %p111 = por %p109, %p110
      %p112 = scmp.ne.s32.totalorder %s101, %s102
      %p113 = scmp.eq.s32.totalorder %s20, 0
      %p114 = por %p112, %p113
      %p115 = scmp.ne.s32.totalorder %s101, %s102
      %p116 = scmp.eq.s32.totalorder %s21, 2
      %p117 = por %p115, %p116
      %p119 = scmp.ne.s32.totalorder %s102, %s118
      %p120 = scmp.eq.s32.totalorder %s21, 0
      %p121 = por %p119, %p120
      %p122 = scmp.le.s32.totalorder 1, %s15
      %p123 = scmp.lt.s32.totalorder %s15, 4
      %p124 = pnand %p122, %p123
      %p125 = pneg %p124
      // Predicated region
      $region9: #{tpu_custom_call.1} parent=5 // pred_check
        _
      $region10: #{tpu_custom_call.1} parent=5 // pred_check_branch
        %127 = sbr.rel (%p124) target = $region12
      $region11: #{tpu_custom_call.1} parent=5 // pred_region
        %s128 = ssub.s32 %s15, 1
        // Predicated region
        $region13: #{tpu_custom_call.1} parent=11 // pred_check
          %p129 = pneg %p88
        $region14: #{tpu_custom_call.1} parent=11 // pred_check_branch
          %131 = sbr.rel (%p129) target = $region16
        $region15: #{tpu_custom_call.1} parent=11 // pred_region
          _
        $region16: #{tpu_custom_call.1} parent=11 // pred_fallthru
          _
      $region12: #{tpu_custom_call.1} parent=5 // pred_fallthru
        _
      %p132 = scmp.lt.s32.totalorder %s15, 3
      // Predicated region
      $region17: #{tpu_custom_call.1} parent=5 // pred_check
        %p133 = pneg %p132
      $region18: #{tpu_custom_call.1} parent=5 // pred_check_branch
        %135 = sbr.rel (%p133) target = $region20
      $region19: #{tpu_custom_call.1} parent=5 // pred_region
        // Predicated region
        $region21: #{tpu_custom_call.1} parent=19 // pred_check
          %p136 = pneg %p35
        $region22: #{tpu_custom_call.1} parent=19 // pred_check_branch
          %138 = sbr.rel (%p136) target = $region24
        $region23: #{tpu_custom_call.1} parent=19 // pred_region
          %s139 = sand.u32 %s25, 1
          %s140 = scalar_lea.sflag [#allocation3], %s139
          %s141 = sand.u32 %s25, 1
          %s142 = smul.addr %s141, 8
          %s143 = scalar_lea.vmem [#allocation2], %s142
          %s145 = ssub.s32 128, 128
          %146 = vsyncadd %s140, %s145
          %s147 = smul.addr %s15, 128
          %s148 = scalar_lea.hbm %s0, %s147
          %s150 = sshll.u32 %s143, 4
          %s151 = int_to_ptr.vmem [resolvable:$true] %s150
          %153 = dma.hbm_to_vmem [thread:$0]  %s148, 128, %s151, %s140
        $region24: #{tpu_custom_call.1} parent=19 // pred_fallthru
          _
        // Predicated region
        $region25: #{tpu_custom_call.1} parent=19 // pred_check
          %p154 = pneg %p61
        $region26: #{tpu_custom_call.1} parent=19 // pred_check_branch
          %156 = sbr.rel (%p154) target = $region28
        $region27: #{tpu_custom_call.1} parent=19 // pred_region
          %p157 = scmp.lt.s32.totalorder %s15, 2
          %s158 = scalar_select %p157, %s15, 2
          %s159 = scalar_lea.vmem %s1, %s158
        $region28: #{tpu_custom_call.1} parent=19 // pred_fallthru
          _
      $region20: #{tpu_custom_call.1} parent=5 // pred_fallthru
        _
      %p160 = scmp.le.s32.totalorder 1, %s15
      %p161 = scmp.lt.s32.totalorder %s15, 4
      %p162 = pnand %p160, %p161
      %p163 = pneg %p162
      // Predicated region
      $region29: #{tpu_custom_call.1} parent=5 // pred_check
        _
      $region30: #{tpu_custom_call.1} parent=5 // pred_check_branch
        %165 = sbr.rel (%p162) target = $region32
      $region31: #{tpu_custom_call.1} parent=5 // pred_region
        %s166 = ssub.s32 %s15, 1
        %s167 = sand.u32 %s28, 1
        %s168 = scalar_lea.sflag [#allocation3], %s167
        %s169 = sand.u32 %s28, 1
        %s170 = smul.addr %s169, 8
        %s171 = scalar_lea.vmem [#allocation2], %s170
        // Predicated region
        $region33: #{tpu_custom_call.1} parent=31 // pred_check
          %p172 = pneg %p41
        $region34: #{tpu_custom_call.1} parent=31 // pred_check_branch
          %174 = sbr.rel (%p172) target = $region36
        $region35: #{tpu_custom_call.1} parent=31 // pred_region
          %175 = dma.done %s168, 128
        $region36: #{tpu_custom_call.1} parent=31 // pred_fallthru
          _
        %s176 = sand.u32 %s28, 1
        %s177 = scalar_lea.sflag [#allocation3], %s176
        %s178 = sand.u32 %s28, 1
        %s179 = smul.addr %s178, 8
        %s180 = scalar_lea.vmem [#allocation2], %s179
        %p181 = pneg %p41
        %p182 = pneg %p38
        %p183 = scmp.lt.s32.totalorder %s20, 2
        %s184 = scalar_select %p183, %s20, 2
        %s185 = scalar_lea.vmem %s1, %s184
        %p186 = pneg %p67
        %p187 = pneg %p64
        %p188 = pneg %p88
        %p189 = pneg %p85
        %p190 = pneg %p114
        %p191 = pneg %p111
        %s192 = sand.u32 %s101, 1
        %s193 = scalar_lea.sflag [#allocation4], %s192
        %s194 = sand.u32 %s101, 1
        %s195 = scalar_lea.vmem [#allocation5], %s194
        %p196 = scmp.lt.s32.totalorder %s20, 2
        %s197 = scalar_select %p196, %s20, 2
        %s198 = scalar_lea.vmem %s1, %s197
        %v199 = vld [vmem:[%s171] sm:$0xff]
        %v200 = vld [vmem:[%s198] sm:$0x1]
        %v201 = vrot.slane %v199, 4
        %v202 = vmax.f32 %v199, %v201
        %v203 = vrot.slane %v202, 2
        %v204 = vmax.f32 %v202, %v203
        %v205 = vrot.slane %v204, 1
        %v206 = vmax.f32 %v204, %v205
        %v207 = vsub.f32 %v199, %v206
        %v208 = vmul.f32 %v207, 1.442695
        %v209 = vpow.pop %v208
        %v210 = vrot.slane %v209, 4
        %v211 = vadd.f32 %v209, %v210
        %v212 = vrot.slane %v211, 2
        %v213 = vadd.f32 %v211, %v212
        %v214 = vrot.slane %v213, 1
        %v215 = vadd.f32 %v213, %v214
        %v216 = vlaneseq
        %v217 = vshrl.u32 %v216, 7
        %v218 = vlaneseq
        %v219 = vshrl.u32 %v218, 7
        %v220 = vsub.s32 0, %v219
        %v221 = vrot.slane %v200, %v220
        %vm222 = vcmp.eq.s32.totalorder %v217, %v221
        %v223 = vsel %vm222, %v207, 0.0
        %v224 = vrot.slane %v223, 4
        %v225 = vadd.f32 %v223, %v224
        %v226 = vrot.slane %v225, 2
        %v227 = vadd.f32 %v225, %v226
        %v228 = vrot.slane %v227, 1
        %v229 = vadd.f32 %v227, %v228
        %v230 = vlog2.pop %v215
        %v231 = vmul.f32 %v230, 0.6931472
        %v232 = vsub.f32 %v229, %v231
        %v233 = vmul.f32 %v232, 1.442695
        %v234 = vpow.pop %v233
        %v235 = vld [vmem:[%s2] sm:$0xff]
        %237 = vset.pattern.permute.xlu0 0
        %238 = vperm.xlu0 %237, %v235
        %v239 = vpop.permute.xlu0 %238
        %v241 = vsel %vm222, %v239, 0.0
        %v242 = vrot.slane %v241, 4
        %v243 = vadd.f32 %v241, %v242
        %v244 = vrot.slane %v243, 2
        %v245 = vadd.f32 %v243, %v244
        %v246 = vrot.slane %v245, 1
        %v247 = vadd.f32 %v245, %v246
        %v248 = vmul.f32 %v232, %v247
        %v249 = vsub.f32 1.0, %v234
        %v250 = vmax.f32 %v249, 0.0
        %v251 = vmul.f32 %v250, %v250
        %v252 = vsub.f32 0.0, %v251
        %v253 = vmul.f32 %v252, %v248
        %254 = vst [vmem:[%s195] sm:$0x1] %v253
        %s255 = sand.u32 %s101, 1
        %s256 = scalar_lea.sflag [#allocation4], %s255
        %s257 = sand.u32 %s101, 1
        %s258 = scalar_lea.vmem [#allocation5], %s257
        // Predicated region
        $region37: #{tpu_custom_call.1} parent=31 // pred_check
          %p259 = pneg %p111
        $region38: #{tpu_custom_call.1} parent=31 // pred_check_branch
          %261 = sbr.rel (%p259) target = $region40
        $region39: #{tpu_custom_call.1} parent=31 // pred_region
          %s263 = ssub.s32 16, 16
          %264 = vsyncadd %s256, %s263
          %s265 = smul.addr %s20, 16
          %s266 = scalar_lea.hbm %s3, %s265
          %s268 = sshll.u32 %s258, 4
          %s269 = int_to_ptr.vmem [resolvable:$true] %s268
          %271 = dma.vmem_to_hbm [thread:$0]  %s269, 16, %s266, %s256
        $region40: #{tpu_custom_call.1} parent=31 // pred_fallthru
          _
      $region32: #{tpu_custom_call.1} parent=5 // pred_fallthru
        _
      %p272 = scmp.le.s32.totalorder 2, %s15
      // Predicated region
      $region41: #{tpu_custom_call.1} parent=5 // pred_check
        %p273 = pneg %p272
      $region42: #{tpu_custom_call.1} parent=5 // pred_check_branch
        %275 = sbr.rel (%p273) target = $region44
      $region43: #{tpu_custom_call.1} parent=5 // pred_region
        %s276 = ssub.s32 %s15, 2
        // Predicated region
        $region45: #{tpu_custom_call.1} parent=43 // pred_check
          %p277 = pneg %p117
        $region46: #{tpu_custom_call.1} parent=43 // pred_check_branch
          %279 = sbr.rel (%p277) target = $region48
        $region47: #{tpu_custom_call.1} parent=43 // pred_region
          %s280 = sand.u32 %s102, 1
          %s281 = scalar_lea.sflag [#allocation4], %s280
          %s282 = sand.u32 %s102, 1
          %s283 = scalar_lea.vmem [#allocation5], %s282
          %284 = dma.done %s281, 16
        $region48: #{tpu_custom_call.1} parent=43 // pred_fallthru
          _
      $region44: #{tpu_custom_call.1} parent=5 // pred_fallthru
        _
    $region6: #{tpu_custom_call.1} parent=1 // loop_footer
      %s19 = sadd.s32 1, %s15
    $region7: #{tpu_custom_call.1} parent=1 // loop_footer_branch
      %14 = sbr.rel target = $region3
    $region8: #{tpu_custom_call.1} parent=1 // loop_exit
      _
    %285 = vsyncpa [#allocation3], 1
    %s286 = scalar_lea.sflag [#allocation3], 1
    %287 = vsyncpa %s286, 1
    %288 = vsyncpa [#allocation4], 1
    %s289 = scalar_lea.sflag [#allocation4], 1
    %290 = vsyncpa %s289, 1

</llo_original>
